<compile_context>
chip_gen: v6e
topology: v6e:2x2x1
jax: 0.10.0
libtpu: 0.0.40
codegen_flags: <defaults>
</compile_context>

<pallas_src>
import functools

import jax
import jax.numpy as jnp
from jax.experimental import pallas as pl
from jax.experimental.pallas import tpu as pltpu


def _cdiv(a, b):
    return -(-a // b)


def _round_up(x, m):
    return ((x + m - 1) // m) * m


def _vmem_plan():
    """Generation-aware (tile_budget_bytes, scoped_vmem_limit_bytes)."""
    try:
        cap = getattr(pltpu.get_tpu_info(), "vmem_capacity_bytes", 64 << 20)
    except Exception:  # pragma: no cover - conservative fallback
        cap = 64 << 20
    if cap <= (64 << 20):          # v7x-class TensorCore: 64 MiB physical VMEM
        return 24 << 20, 48 << 20
    return 40 << 20, 64 << 20      # v5e / v6e: 128 MiB physical VMEM


def _contrastive_loss_kernel(x0_ref, x1_ref, y_ref, out_ref, acc_ref, *,
                             margin, num_rows, tile_b, tiles_per_split,
                             apply_mask):
    s = pl.program_id(0)           # "parallel" batch-split (core) axis
    t = pl.program_id(1)           # "arbitrary" reduction axis over row tiles

    @pl.when(t == 0)
    def _init():
        acc_ref[...] = jnp.zeros_like(acc_ref)

    x0 = x0_ref[...].astype(jnp.float32)     # (TB, D)
    x1 = x1_ref[...].astype(jnp.float32)     # (TB, D)
    y = y_ref[...].astype(jnp.float32)       # (TB, 1)

    diff = x0 - x1
    dist_sq = jnp.sum(diff * diff, axis=1, keepdims=True)   # (TB, 1), XLU
    dist = jnp.sqrt(dist_sq)                                 # EUP
    mdist = jnp.maximum(margin - dist, 0.0)                  # torch.clamp(min=0)
    loss = y * dist_sq + (1.0 - y) * (mdist * mdist)         # (TB, 1)

    if apply_mask:
        # Only emitted when the last / dead tiles have rows beyond B.
        row = ((s * tiles_per_split + t) * tile_b
               + jax.lax.broadcasted_iota(jnp.int32, loss.shape, 0))
        loss = jnp.where(row < num_rows, loss, 0.0)

    # Scalar (single-vreg) accumulation; the per-step reduce hides under DMA.
    acc_ref[...] += jnp.sum(loss, keepdims=True)

    @pl.when(t == pl.num_programs(1) - 1)
    def _finish():
        out_ref[...] = (acc_ref[...] / (2.0 * num_rows)).reshape(1, 1, 1)


def contrastive_loss(x0, x1, y, margin=1.0, *, tile_b=None,
                     vmem_budget_bytes=None):
    """x0, x1: (B, D) float arrays; y: (B,) labels (0/1). Returns scalar loss."""
    B, D = x0.shape
    assert x1.shape == (B, D)
    y2d = jnp.reshape(y, (B, 1)).astype(jnp.float32)

    budget, vmem_limit = _vmem_plan()
    if vmem_budget_bytes is not None:
        budget = int(vmem_budget_bytes)

    itemsize = jnp.dtype(x0.dtype).itemsize
    if tile_b is None:
        d_pad = _round_up(D, 128)
        # Per row of tile: x0 + x1 (double-buffered, native dtype, lane-padded D)
        # plus the lane-padded (TB,1) f32 y tile (double-buffered).
        per_row = 2 * (2 * d_pad * itemsize) + 2 * 128 * 4
        tile_b = max(8, (budget // per_row // 8) * 8)
        # Keep >= ~4 row tiles for large batches so the DMA pipeline and the
        # 2-way core split both have work.
        tile_b = min(tile_b, max(8, _round_up(_cdiv(B, 4), 8)))
    else:
        tile_b = max(8, (int(tile_b) // 8) * 8)     # sublane-aligned
    tile_b = min(tile_b, _round_up(B, 8))           # never exceed the batch

    num_tiles = _cdiv(B, tile_b)
    n_splits = 2 if num_tiles >= 2 else 1           # feeds both TCs on v7x
    tiles_per_split = _cdiv(num_tiles, n_splits)
    has_dead = n_splits * tiles_per_split != num_tiles
    needs_mask = has_dead or (B % tile_b != 0)
    last_block = num_tiles - 1

    def _row_block(s, t):
        b = s * tiles_per_split + t
        if has_dead:
            b = jnp.minimum(b, last_block)          # keep the DMA in bounds
        return b

    kernel = functools.partial(
        _contrastive_loss_kernel,
        margin=float(margin), num_rows=B, tile_b=tile_b,
        tiles_per_split=tiles_per_split, apply_mask=needs_mask,
    )

    bytes_accessed = (x0.size * x0.dtype.itemsize
                      + x1.size * x1.dtype.itemsize
                      + y2d.size * 4 + n_splits * 4)

    partials = pl.pallas_call(
        kernel,
        out_shape=jax.ShapeDtypeStruct((n_splits, 1, 1), jnp.float32),
        grid=(n_splits, tiles_per_split),
        in_specs=[
            pl.BlockSpec((tile_b, D), lambda s, t: (_row_block(s, t), 0)),
            pl.BlockSpec((tile_b, D), lambda s, t: (_row_block(s, t), 0)),
            pl.BlockSpec((tile_b, 1), lambda s, t: (_row_block(s, t), 0)),
        ],
        out_specs=pl.BlockSpec((1, 1, 1), lambda s, t: (s, 0, 0)),
        scratch_shapes=[pltpu.VMEM((1, 1), jnp.float32)],
        compiler_params=pltpu.CompilerParams(
            dimension_semantics=("parallel", "arbitrary"),
            vmem_limit_bytes=vmem_limit,
        ),
        cost_estimate=pl.CostEstimate(
            flops=6 * B * D,
            transcendentals=B,
            bytes_accessed=bytes_accessed,
        ),
    )(x0, x1, y2d)

    # Each per-split partial already carries the 1/(2B) scale.
    return jnp.sum(partials)


def contrastive_loss_ref(x0, x1, y, margin=1.0):
    """Pure-JAX reference mirroring the PyTorch module."""
    diff = x0 - x1
    dist_sq = jnp.sum(diff ** 2, axis=1)
    dist = jnp.sqrt(dist_sq)
    mdist = jnp.maximum(margin - dist, 0.0)
    loss = y * dist_sq + (1.0 - y) * mdist ** 2
    return jnp.sum(loss) / 2.0 / x0.shape[0]


if __name__ == "__main__":
    key = jax.random.PRNGKey(0)
    k0, k1, ky, k2, k3, k4, k5, k6, k7 = jax.random.split(key, 9)

    # Small demo shapes consistent with the module's forward (pairs of vectors).
    B, D = 8, 32
    x0 = jax.random.normal(k0, (B, D), dtype=jnp.float32)
    x1 = jax.random.normal(k1, (B, D), dtype=jnp.float32)
    y = jax.random.bernoulli(ky, 0.5, (B,)).astype(jnp.float32)

    out = jax.block_until_ready(contrastive_loss(x0, x1, y, margin=1.0))
    ref = contrastive_loss_ref(x0, x1, y, margin=1.0)
    assert jnp.allclose(out, ref, rtol=1e-5, atol=1e-5), (out, ref)

    # Multi-tile path: 2-way parallel split, dead tile (clamped DMA) and a
    # ragged last tile (row mask).
    B2, D2 = 300, 128
    x0b = jax.random.normal(k2, (B2, D2), dtype=jnp.float32)
    x1b = jax.random.normal(k3, (B2, D2), dtype=jnp.float32)
    yb = jax.random.bernoulli(k4, 0.5, (B2,)).astype(jnp.float32)
    out2 = jax.block_until_ready(contrastive_loss(x0b, x1b, yb, margin=0.8,
                                                  tile_b=64))
    ref2 = contrastive_loss_ref(x0b, x1b, yb, margin=0.8)
    assert jnp.allclose(out2, ref2, rtol=2e-5, atol=1e-4), (out2, ref2)

    # Tiny batch (B < 8): relies on block padding plus the row mask; bf16 wire
    # dtype with f32 in-kernel accumulation.
    B3, D3 = 5, 256
    x0c = jax.random.normal(k5, (B3, D3), dtype=jnp.bfloat16)
    x1c = jax.random.normal(k6, (B3, D3), dtype=jnp.bfloat16)
    yc = jax.random.bernoulli(k7, 0.5, (B3,)).astype(jnp.float32)
    out3 = jax.block_until_ready(contrastive_loss(x0c, x1c, yc, margin=1.0))
    ref3 = contrastive_loss_ref(x0c.astype(jnp.float32),
                                x1c.astype(jnp.float32), yc, margin=1.0)
    assert jnp.allclose(out3, ref3, rtol=5e-3, atol=5e-3), (out3, ref3)

    print("KERNEL_OK")
</pallas_src>

<mosaic_0001>
module attributes {stable_mosaic.version = 11 : i64} {
  func.func @_contrastive_loss_kernel(%arg0: i32, %arg1: i32, %arg2: memref<8x32xf32, #tpu.memory_space<vmem>>, %arg3: memref<8x32xf32, #tpu.memory_space<vmem>>, %arg4: memref<8x1xf32, #tpu.memory_space<vmem>>, %arg5: memref<1x1x1xf32, #tpu.memory_space<vmem>>, %arg6: memref<1x1xf32, #tpu.memory_space<vmem>>) attributes {dimension_semantics = [#tpu.dimension_semantics<parallel>, #tpu.dimension_semantics<arbitrary>], iteration_bounds = array<i64: 1, 1>, scalar_prefetch = 0 : i64, scratch_operands = 1 : i64, tpu.core_type = #tpu.core_type<tc>, window_params = [{transform_indices = @transform_0, window_bounds = array<i64: 8, 32>}, {transform_indices = @transform_1, window_bounds = array<i64: 8, 32>}, {transform_indices = @transform_2, window_bounds = array<i64: 8, 1>}, {transform_indices = @transform_3, window_bounds = array<i64: 1, 1, 1>}]} {
    %c0_i32 = arith.constant 0 : i32
    %0 = arith.cmpi eq, %arg1, %c0_i32 : i32
    %1 = arith.extui %0 : i1 to i32
    %c0_i32_0 = arith.constant 0 : i32
    %2 = arith.cmpi ne, %1, %c0_i32_0 : i32
    scf.if %2 {
      %cst_16 = arith.constant 0.000000e+00 : f32
      %32 = vector.broadcast %cst_16 : f32 to vector<1x1xf32>
      %c0_17 = arith.constant 0 : index
      %c0_18 = arith.constant 0 : index
      %33 = vector.load %arg6[%c0_17, %c0_18] : memref<1x1xf32, #tpu.memory_space<vmem>>, vector<1x1xf32>
      tpu.vector_store %arg6[%c0_17, %c0_18], %32 {strides = array<i32>} : memref<1x1xf32, #tpu.memory_space<vmem>>, vector<1x1xf32>,
    } else {
    }
    %c0 = arith.constant 0 : index
    %c0_1 = arith.constant 0 : index
    %3 = vector.load %arg2[%c0, %c0_1] : memref<8x32xf32, #tpu.memory_space<vmem>>, vector<8x32xf32>
    %c0_2 = arith.constant 0 : index
    %c0_3 = arith.constant 0 : index
    %4 = vector.load %arg3[%c0_2, %c0_3] : memref<8x32xf32, #tpu.memory_space<vmem>>, vector<8x32xf32>
    %c0_4 = arith.constant 0 : index
    %c0_5 = arith.constant 0 : index
    %5 = vector.load %arg4[%c0_4, %c0_5] : memref<8x1xf32, #tpu.memory_space<vmem>>, vector<8x1xf32>
    %6 = arith.subf %3, %4 : vector<8x32xf32>
    %7 = arith.mulf %6, %6 : vector<8x32xf32>
    %cst = arith.constant dense<0.000000e+00> : vector<8xf32>
    %8 = vector.multi_reduction <add>, %7, %cst [1] : vector<8x32xf32> to vector<8xf32>
    %9 = vector.shape_cast %8 : vector<8xf32> to vector<8x1xf32>
    %10 = math.sqrt %9 : vector<8x1xf32>
    %cst_6 = arith.constant 1.000000e+00 : f32
    %11 = vector.broadcast %cst_6 : f32 to vector<8x1xf32>
    %12 = arith.subf %11, %10 : vector<8x1xf32>
    %cst_7 = arith.constant 0.000000e+00 : f32
    %13 = vector.broadcast %cst_7 : f32 to vector<8x1xf32>
    %14 = arith.maximumf %12, %13 : vector<8x1xf32>
    %15 = arith.mulf %5, %9 : vector<8x1xf32>
    %cst_8 = arith.constant 1.000000e+00 : f32
    %16 = vector.broadcast %cst_8 : f32 to vector<8x1xf32>
    %17 = arith.subf %16, %5 : vector<8x1xf32>
    %18 = arith.mulf %14, %14 : vector<8x1xf32>
    %19 = arith.mulf %17, %18 : vector<8x1xf32>
    %20 = arith.addf %15, %19 : vector<8x1xf32>
    %c0_9 = arith.constant 0 : index
    %c0_10 = arith.constant 0 : index
    %21 = vector.load %arg6[%c0_9, %c0_10] : memref<1x1xf32, #tpu.memory_space<vmem>>, vector<1x1xf32>
    %22 = vector.shape_cast %20 : vector<8x1xf32> to vector<1x8x1xf32>
    %cst_11 = arith.constant dense<0.000000e+00> : vector<1xf32>
    %23 = vector.multi_reduction <add>, %22, %cst_11 [1, 2] : vector<1x8x1xf32> to vector<1xf32>
    %24 = vector.shape_cast %23 : vector<1xf32> to vector<1x1x1xf32>
    %25 = vector.extract %24[0, 0, 0] : f32 from vector<1x1x1xf32>
    %26 = vector.broadcast %25 : f32 to vector<1x1xf32>
    %27 = arith.addf %21, %26 : vector<1x1xf32>
    %c0_12 = arith.constant 0 : index
    %c0_13 = arith.constant 0 : index
    %28 = vector.load %arg6[%c0_12, %c0_13] : memref<1x1xf32, #tpu.memory_space<vmem>>, vector<1x1xf32>
    tpu.vector_store %arg6[%c0_12, %c0_13], %27 {strides = array<i32>} : memref<1x1xf32, #tpu.memory_space<vmem>>, vector<1x1xf32>,
    %c0_i32_14 = arith.constant 0 : i32
    %29 = arith.cmpi eq, %arg1, %c0_i32_14 : i32
    %30 = arith.extui %29 : i1 to i32
    %c0_i32_15 = arith.constant 0 : i32
    %31 = arith.cmpi ne, %30, %c0_i32_15 : i32
    scf.if %31 {
      %c0_16 = arith.constant 0 : index
      %c0_17 = arith.constant 0 : index
      %32 = vector.load %arg6[%c0_16, %c0_17] : memref<1x1xf32, #tpu.memory_space<vmem>>, vector<1x1xf32>
      %cst_18 = arith.constant 1.600000e+01 : f32
      %33 = vector.broadcast %cst_18 : f32 to vector<1x1xf32>
      %34 = arith.divf %32, %33 : vector<1x1xf32>
      %35 = vector.shape_cast %34 : vector<1x1xf32> to vector<1x1x1xf32>
      %c0_19 = arith.constant 0 : index
      %c0_20 = arith.constant 0 : index
      %c0_21 = arith.constant 0 : index
      %36 = vector.load %arg5[%c0_19, %c0_20, %c0_21] : memref<1x1x1xf32, #tpu.memory_space<vmem>>, vector<1x1x1xf32>
      tpu.vector_store %arg5[%c0_19, %c0_20, %c0_21], %35 {strides = array<i32>} : memref<1x1x1xf32, #tpu.memory_space<vmem>>, vector<1x1x1xf32>,
    } else {
    }
    return
  }
  func.func @transform_0(%arg0: i32, %arg1: i32) -> (i32, i32) {
    %c1_i32 = arith.constant 1 : i32
    %0 = arith.muli %arg0, %c1_i32 : i32
    %1 = arith.addi %0, %arg1 : i32
    %c0_i32 = arith.constant 0 : i32
    %c0_i32_0 = arith.constant 0 : i32
    return %1, %c0_i32 : i32, i32
  }
  func.func @transform_1(%arg0: i32, %arg1: i32) -> (i32, i32) {
    %c1_i32 = arith.constant 1 : i32
    %0 = arith.muli %arg0, %c1_i32 : i32
    %1 = arith.addi %0, %arg1 : i32
    %c0_i32 = arith.constant 0 : i32
    %c0_i32_0 = arith.constant 0 : i32
    return %1, %c0_i32 : i32, i32
  }
  func.func @transform_2(%arg0: i32, %arg1: i32) -> (i32, i32) {
    %c1_i32 = arith.constant 1 : i32
    %0 = arith.muli %arg0, %c1_i32 : i32
    %1 = arith.addi %0, %arg1 : i32
    %c0_i32 = arith.constant 0 : i32
    %c0_i32_0 = arith.constant 0 : i32
    return %1, %c0_i32 : i32, i32
  }
  func.func @transform_3(%arg0: i32, %arg1: i32) -> (i32, i32, i32) {
    %c0_i32 = arith.constant 0 : i32
    %c0_i32_0 = arith.constant 0 : i32
    %c0_i32_1 = arith.constant 0 : i32
    return %arg0, %c0_i32, %c0_i32_0 : i32, i32, i32
  }
}

</mosaic_0001>

<llo_original>
// kernel: tpu_custom_call.1
$region0: #{tpu_custom_call.1}
  #allocation0 [shape = 'u32[]', space=smem, size = 0x4, offset = 0x4, fixed_abs, tag = 'smem constant byte address 0x4 - core index']
  #allocation1 [shape = 'u32[144,128]{1,0:T(1,128)}', space=vmem, size = 0x12000, scoped, tag = 'internal scratch']
  #allocation2 [shape = 'f32[1,1]{1,0:T(1,128)}', space=vmem, size = 0x200, scoped, tag = 'scratch operand']
  %s0 = inlined_call_operand.vmem [shape: f32[8,32], index: 0, kind: input, shape index: {}]
  %s1 = inlined_call_operand.hbm [shape: f32[8,32], index: 1, kind: input, shape index: {}]
  %s2 = inlined_call_operand.vmem [shape: f32[8,1], index: 2, kind: input, shape index: {}]
  %s3 = inlined_call_operand.hbm [shape: f32[1,1,1], index: 3, kind: output, shape index: {}]
  %s4 = sld [smem:[#allocation0]]
  $region34: #{tpu_custom_call.1} parent=0
    _
  %s6 = ssub.s32 1, %s4
  %s7 = scalar_select 0, %s6, %s4
  $region1: #{tpu_custom_call.1} parent=0
    #allocation3 [shape = 'u8[4096]{0}', space=vmem, size = 0x1000, scoped, tag = 'input window, operand 1, single buffered']
    #allocation4 [shape = 's32[1]{0}', space=sflag, size = 0x4, scoped, tag = 'scoped memory for tpu_custom_call.1']
    #allocation5 [shape = 's32[1]{0}', space=sflag, size = 0x4, scoped, tag = 'scoped memory for tpu_custom_call.1']
    #allocation6 [shape = 'u8[512]{0}', space=vmem, size = 0x400, scoped, tag = 'output window, operand 0, single buffered']
    %8 = vsyncpa [#allocation4], 0
    %9 = vsyncpa [#allocation5], 0
    // Predicated region
    $region2: #{tpu_custom_call.1} parent=1 // pred_check
      _
    $region3: #{tpu_custom_call.1} parent=1 // pred_check_branch
      %11 = sbr.rel (0) target = $region5
    $region4: #{tpu_custom_call.1} parent=1 // pred_region
      %s12 = sadd.s32 0, 0
      %p13 = scmp.lt.s32.totalorder %s12, 0
      %s14 = scalar_select %p13, %s12, 0
      %s15 = smul.addr %s14, 8
      %s16 = scalar_lea.vmem %s0, %s15
      %s17 = sadd.s32 0, 0
    $region5: #{tpu_custom_call.1} parent=1 // pred_fallthru
      _
    // Predicated region
    $region6: #{tpu_custom_call.1} parent=1 // pred_check
      _
    $region7: #{tpu_custom_call.1} parent=1 // pred_check_branch
      %19 = sbr.rel (0) target = $region9
    $region8: #{tpu_custom_call.1} parent=1 // pred_region
      %s20 = sadd.s32 0, 0
      %s22 = ssub.s32 128, 128
      %23 = vsyncadd [#allocation4], %s22
      %s24 = smul.addr %s20, 128
      %s25 = scalar_lea.hbm %s1, %s24
      %s27 = sshll.u32 [#allocation3], 4
      %s28 = int_to_ptr.vmem [resolvable:$true] %s27
      %30 = dma.hbm_to_vmem [thread:$0]  %s25, 128, %s28, [#allocation4]
    $region9: #{tpu_custom_call.1} parent=1 // pred_fallthru
      _
    // Predicated region
    $region10: #{tpu_custom_call.1} parent=1 // pred_check
      _
    $region11: #{tpu_custom_call.1} parent=1 // pred_check_branch
      %32 = sbr.rel (0) target = $region13
    $region12: #{tpu_custom_call.1} parent=1 // pred_region
      %s33 = sadd.s32 0, 0
      %p34 = scmp.lt.s32.totalorder %s33, 0
      %s35 = scalar_select %p34, %s33, 0
      %s36 = smul.addr %s35, 8
      %s37 = scalar_lea.vmem %s2, %s36
      %s38 = sadd.s32 0, 0
    $region13: #{tpu_custom_call.1} parent=1 // pred_fallthru
      _
    // Predicated region
    $region14: #{tpu_custom_call.1} parent=1 // pred_check
      _
    $region15: #{tpu_custom_call.1} parent=1 // pred_check_branch
      %40 = sbr.rel (0) target = $region17
    $region16: #{tpu_custom_call.1} parent=1 // pred_region
      %41 = dma.done [#allocation4], 128
    $region17: #{tpu_custom_call.1} parent=1 // pred_fallthru
      _
    %s42 = sadd.s32 0, 0
    %p43 = scmp.lt.s32.totalorder %s42, 0
    %s44 = scalar_select %p43, %s42, 0
    %s45 = smul.addr %s44, 8
    %s46 = scalar_lea.vmem %s0, %s45
    %s47 = sadd.s32 0, 0
    %p48 = scmp.lt.s32.totalorder %s47, 0
    %s49 = scalar_select %p48, %s47, 0
    %s50 = smul.addr %s49, 8
    %s51 = scalar_lea.vmem %s2, %s50
    %s52 = sadd.s32 0, 0
    %p53 = scmp.lt.s32.totalorder %s52, 0
    %s54 = scalar_select %p53, %s52, 0
    %s55 = smul.addr %s54, 8
    %s56 = scalar_lea.vmem %s0, %s55
    %s57 = sadd.s32 0, 0
    %s58 = sadd.s32 0, 0
    %s59 = sadd.s32 0, 0
    %p60 = scmp.lt.s32.totalorder %s59, 0
    %s61 = scalar_select %p60, %s59, 0
    %s62 = smul.addr %s61, 8
    %s63 = scalar_lea.vmem %s2, %s62
    %s64 = sadd.s32 0, 0
    %p65 = scmp.eq.s32.totalorder 0, 0
    // Predicated region
    $region18: #{tpu_custom_call.1} parent=1 // pred_check
      %p66 = pneg %p65
    $region19: #{tpu_custom_call.1} parent=1 // pred_check_branch
      %68 = sbr.rel (%p66) target = $region21
    $region20: #{tpu_custom_call.1} parent=1 // pred_region
      %vm69 = vcmask 0
      %70 = vst.msk [vmem:[#allocation2] sm:$0x1] %vm69, 0.0
    $region21: #{tpu_custom_call.1} parent=1 // pred_fallthru
      _
    %v71 = vld [vmem:[%s56] sm:$0xff]
    %v72 = vld [vmem:[#allocation3] sm:$0xff]
    %v73 = vld [vmem:[%s63] sm:$0xff]
    %v74 = vsub.f32 %v71, %v72
    %v75 = vmul.f32 %v74, %v74
    %vm76 = vcmask 261120
    %v77 = vsel %vm76, %v75, 0.0
    %78 = vadd.xlane.f32.xlu0 %v77
    %v79 = vpop.xlane.xlu0 %78
    %v80 = vrsqrt.pop %v79
    %v81 = vmul.f32 %v79, %v80
    %vm82 = vcmp.eq.f32.partialorder %v79, inf
    %v83 = vsel %vm82, %v79, %v81
    %vm84 = vcmp.eq.f32.partialorder %v79, 0.0
    %v85 = vand.u32 %v79, 2147483648
    %v86 = vsel %vm84, %v85, %v83
    %v87 = vsub.f32 1.0, %v86
    %v88 = vmax.f32 %v87, 0.0
    %v89 = vmul.f32 %v73, %v79
    %v90 = vsub.f32 1.0, %v73
    %v91 = vmul.f32 %v88, %v88
    %v92 = vmul.f32 %v90, %v91
    %v93 = vadd.f32 %v89, %v92
    %v94 = vld [vmem:[#allocation2] sm:$0x1]
    %vm95 = vcmask 7168
    %v96 = vsel %vm95, %v93, 0.0
    %97 = vadd.xlane.f32.xlu0 %v96
    %v98 = vpop.xlane.xlu0 %97
    %v99 = vrot.slane %v98, 4
    %v100 = vadd.f32 %v98, %v99
    %v101 = vrot.slane %v100, 2
    %v102 = vadd.f32 %v100, %v101
    %v103 = vrot.slane %v102, 1
    %v104 = vadd.f32 %v102, %v103
    %s105 = vtos %v104
    %v106 = vstv %s105
    %v107 = vadd.f32 %v94, %v106
    %vm108 = vcmask 0
    %109 = vst.msk [vmem:[#allocation2] sm:$0x1] %vm108, %v107
    // Predicated region
    $region22: #{tpu_custom_call.1} parent=1 // pred_check
      %p110 = pneg %p65
    $region23: #{tpu_custom_call.1} parent=1 // pred_check_branch
      %112 = sbr.rel (%p110) target = $region25
    $region24: #{tpu_custom_call.1} parent=1 // pred_region
      %v113 = vld [vmem:[#allocation2] sm:$0x1]
      %v114 = vrcp.pop 16.0
      %v115 = vmul.f32 %v113, %v114
      %116 = vst.msk [vmem:[#allocation6] sm:$0x1] %vm108, %v115
    $region25: #{tpu_custom_call.1} parent=1 // pred_fallthru
      _
    // Predicated region
    $region26: #{tpu_custom_call.1} parent=1 // pred_check
      _
    $region27: #{tpu_custom_call.1} parent=1 // pred_check_branch
      %118 = sbr.rel (0) target = $region29
    $region28: #{tpu_custom_call.1} parent=1 // pred_region
      %s120 = ssub.s32 16, 16
      %121 = vsyncadd [#allocation5], %s120
      %s123 = sshll.u32 [#allocation6], 4
      %s124 = int_to_ptr.vmem [resolvable:$true] %s123
      %126 = dma.vmem_to_hbm [thread:$0]  %s124, 16, %s3, [#allocation5]
    $region29: #{tpu_custom_call.1} parent=1 // pred_fallthru
      _
    // Predicated region
    $region30: #{tpu_custom_call.1} parent=1 // pred_check
      _
    $region31: #{tpu_custom_call.1} parent=1 // pred_check_branch
      %128 = sbr.rel (0) target = $region33
    $region32: #{tpu_custom_call.1} parent=1 // pred_region
      %129 = dma.done [#allocation5], 16
    $region33: #{tpu_custom_call.1} parent=1 // pred_fallthru
      _
    %130 = vsyncpa [#allocation4], 1
    %131 = vsyncpa [#allocation5], 1

</llo_original>
